<compile_context>
chip_gen: v6e
topology: v6e:2x2x1
jax: 0.10.0
libtpu: 0.0.40
codegen_flags: <defaults>
</compile_context>

<pallas_src>
import functools

import jax
import jax.numpy as jnp
from jax.experimental import pallas as pl
from jax.experimental.pallas import tpu as pltpu

_LANE = 128
_SUBLANE = 8
_MAX_BLOCK_ROWS = 512
_TARGET_BLOCK_BYTES = 4 * 1024 * 1024   # per input buffer (Pallas double-buffers it)
_VMEM_LIMIT_BYTES = 32 * 1024 * 1024    # 2 x ~4 MiB buffers + scratch, ample headroom


def _cdiv(a, b):
    return -(-a // b)


def _round_up(x, m):
    return _cdiv(x, m) * m


# ---------------------------------------------------------------------------
# Fast path: full-width rows, 1-D grid over row blocks, no scratch.
# ---------------------------------------------------------------------------
def _gap_fullrow_kernel(x_ref, o_ref, *, inv_count):
    x = x_ref[...].astype(jnp.float32)
    o_ref[...] = (jnp.sum(x, axis=1, keepdims=True)
                  * jnp.float32(inv_count)).astype(o_ref.dtype)


# ---------------------------------------------------------------------------
# Fallback path: column-tiled reduction with a lane-aligned f32 accumulator.
# ---------------------------------------------------------------------------
def _gap_accum_kernel(x_ref, o_ref, acc_ref, *, inv_count, cols, block_cols,
                      ragged_cols):
    j = pl.program_id(1)

    @pl.when(j == 0)
    def _():
        acc_ref[...] = jnp.zeros_like(acc_ref)

    x = x_ref[...].astype(jnp.float32)
    if ragged_cols:
        # Zero lanes past the true H*W so garbage from the ragged edge block
        # never enters the sum (replaces the old materializing jnp.pad).
        col_ids = j * block_cols + jax.lax.broadcasted_iota(jnp.int32, x.shape, 1)
        x = jnp.where(col_ids < cols, x, 0.0)

    # Lane-aligned partial sums: pure VPU adds in the hot loop; the cross-lane
    # (XLU) reduce is deferred to the epilogue.
    acc_ref[...] += jnp.sum(x.reshape(x.shape[0], -1, _LANE), axis=1)

    @pl.when(j == pl.num_programs(1) - 1)
    def _():
        o_ref[...] = (jnp.sum(acc_ref[...], axis=1, keepdims=True)
                      * jnp.float32(inv_count)).astype(o_ref.dtype)


def simple_avg_pool(x):
    """Pallas equivalent of SimpleAvgPool.forward: x.view(n, c, -1).mean(-1)."""
    n, c, h, w = x.shape
    rows = n * c
    cols = h * w
    # TODO(synk): like torch.mean, only floating-point inputs are supported
    # (output keeps x.dtype, so integer inputs would silently truncate).
    x2d = x.reshape(rows, cols)
    dtype_bytes = jnp.dtype(x.dtype).itemsize
    inv_count = 1.0 / float(cols)

    # Largest multiple-of-8 row count whose full-width strip fits the budget.
    budget_rows = (_TARGET_BLOCK_BYTES // (cols * dtype_bytes)) // _SUBLANE * _SUBLANE

    if budget_rows >= _SUBLANE:
        # ---------------- fast path: block spans the whole row --------------
        max_block_rows = min(_MAX_BLOCK_ROWS, budget_rows)
        if max_block_rows >= rows:
            if rows >= 2 * _SUBLANE:
                # Split rows into >=2 blocks so the "parallel" axis can feed
                # both v7x TensorCores (neutral on single-TC v5e/v6e).
                block_rows = _round_up(_cdiv(rows, 2), _SUBLANE)
            else:
                block_rows = rows  # full dim -> exempt from 8-divisibility
        else:
            # Balance row blocks so padding waste is < one sublane group.
            nb = _cdiv(rows, max_block_rows)
            block_rows = _round_up(_cdiv(rows, nb), _SUBLANE)
        grid_rows = _cdiv(rows, block_rows)

        out2d = pl.pallas_call(
            functools.partial(_gap_fullrow_kernel, inv_count=inv_count),
            out_shape=jax.ShapeDtypeStruct((rows, 1), x.dtype),
            grid=(grid_rows,),
            in_specs=[pl.BlockSpec((block_rows, cols), lambda i: (i, 0))],
            out_specs=pl.BlockSpec((block_rows, 1), lambda i: (i, 0)),
            compiler_params=pltpu.CompilerParams(
                dimension_semantics=("parallel",),
                vmem_limit_bytes=_VMEM_LIMIT_BYTES,
            ),
        )(x2d)
    else:
        # ------------- fallback: H*W too large for a full-width strip -------
        nb = max(1, _cdiv(rows, 64))
        if rows >= 2 * _SUBLANE:
            nb = max(nb, 2)
        block_rows = _round_up(_cdiv(rows, nb), _SUBLANE)
        if block_rows >= rows:
            block_rows = rows
        budget_cols = max(
            _LANE,
            (_TARGET_BLOCK_BYTES // (block_rows * dtype_bytes)) // _LANE * _LANE)
        block_cols = min(budget_cols, (cols // _LANE) * _LANE)
        grid_rows = _cdiv(rows, block_rows)
        grid_cols = _cdiv(cols, block_cols)
        ragged_cols = (cols % block_cols) != 0

        out2d = pl.pallas_call(
            functools.partial(_gap_accum_kernel, inv_count=inv_count, cols=cols,
                              block_cols=block_cols, ragged_cols=ragged_cols),
            out_shape=jax.ShapeDtypeStruct((rows, 1), x.dtype),
            grid=(grid_rows, grid_cols),
            in_specs=[pl.BlockSpec((block_rows, block_cols), lambda i, j: (i, j))],
            out_specs=pl.BlockSpec((block_rows, 1), lambda i, j: (i, 0)),
            scratch_shapes=[pltpu.VMEM((block_rows, _LANE), jnp.float32)],
            compiler_params=pltpu.CompilerParams(
                dimension_semantics=("parallel", "arbitrary"),
                vmem_limit_bytes=_VMEM_LIMIT_BYTES,
            ),
        )(x2d)

    return out2d[:, 0].reshape(n, c)


if __name__ == "__main__":
    key = jax.random.PRNGKey(0)

    # Primary check: the module's canonical NCHW input.
    x = jax.random.normal(key, (2, 4, 16, 16), dtype=jnp.float32)
    y = jax.block_until_ready(simple_avg_pool(x))
    assert y.shape == (2, 4) and y.dtype == x.dtype
    ref = jnp.mean(x.reshape(2, 4, -1), axis=-1)
    assert jnp.allclose(y, ref, atol=1e-5, rtol=1e-5), (y, ref)

    # Ragged spatial size (classic 7x7 GAP): exercises the no-pad full-width path.
    x2 = jax.random.normal(jax.random.PRNGKey(1), (2, 3, 7, 7), dtype=jnp.float32)
    y2 = jax.block_until_ready(simple_avg_pool(x2))
    ref2 = jnp.mean(x2.reshape(2, 3, -1), axis=-1)
    assert jnp.allclose(y2, ref2, atol=1e-5, rtol=1e-5), (y2, ref2)

    # Enough rows to split into >=2 "parallel" row blocks (v7x megacore path).
    x3 = jax.random.normal(jax.random.PRNGKey(2), (4, 8, 16, 16), dtype=jnp.float32)
    y3 = jax.block_until_ready(simple_avg_pool(x3))
    ref3 = jnp.mean(x3.reshape(4, 8, -1), axis=-1)
    assert jnp.allclose(y3, ref3, atol=1e-5, rtol=1e-5), (y3, ref3)

    print("KERNEL_OK")
</pallas_src>

<mosaic_0001>
module attributes {stable_mosaic.version = 11 : i64} {
  func.func @_gap_fullrow_kernel(%arg0: i32, %arg1: memref<8x256xf32, #tpu.memory_space<vmem>>, %arg2: memref<8x1xf32, #tpu.memory_space<vmem>>) attributes {dimension_semantics = [#tpu.dimension_semantics<parallel>], iteration_bounds = array<i64: 1>, scalar_prefetch = 0 : i64, scratch_operands = 0 : i64, tpu.core_type = #tpu.core_type<tc>, window_params = [{transform_indices = @transform_0, window_bounds = array<i64: 8, 256>}, {transform_indices = @transform_1, window_bounds = array<i64: 8, 1>}]} {
    %c0 = arith.constant 0 : index
    %c0_0 = arith.constant 0 : index
    %0 = vector.load %arg1[%c0, %c0_0] : memref<8x256xf32, #tpu.memory_space<vmem>>, vector<8x256xf32>
    %cst = arith.constant dense<0.000000e+00> : vector<8xf32>
    %1 = vector.multi_reduction <add>, %0, %cst [1] : vector<8x256xf32> to vector<8xf32>
    %2 = vector.shape_cast %1 : vector<8xf32> to vector<8x1xf32>
    %cst_1 = arith.constant 3.906250e-03 : f32
    %3 = vector.broadcast %cst_1 : f32 to vector<8x1xf32>
    %4 = arith.mulf %2, %3 : vector<8x1xf32>
    %c0_2 = arith.constant 0 : index
    %c0_3 = arith.constant 0 : index
    %5 = vector.load %arg2[%c0_2, %c0_3] : memref<8x1xf32, #tpu.memory_space<vmem>>, vector<8x1xf32>
    tpu.vector_store %arg2[%c0_2, %c0_3], %4 {strides = array<i32>} : memref<8x1xf32, #tpu.memory_space<vmem>>, vector<8x1xf32>,
    return
  }
  func.func @transform_0(%arg0: i32) -> (i32, i32) {
    %c0_i32 = arith.constant 0 : i32
    %c0_i32_0 = arith.constant 0 : i32
    return %arg0, %c0_i32 : i32, i32
  }
  func.func @transform_1(%arg0: i32) -> (i32, i32) {
    %c0_i32 = arith.constant 0 : i32
    %c0_i32_0 = arith.constant 0 : i32
    return %arg0, %c0_i32 : i32, i32
  }
}

</mosaic_0001>

<llo_original>
// kernel: tpu_custom_call.1
$region0: #{tpu_custom_call.1}
  #allocation0 [shape = 'u32[]', space=smem, size = 0x4, offset = 0x4, fixed_abs, tag = 'smem constant byte address 0x4 - core index']
  #allocation1 [shape = 'u32[144,128]{1,0:T(1,128)}', space=vmem, size = 0x12000, scoped, tag = 'internal scratch']
  %s0 = inlined_call_operand.hbm [shape: f32[8,256], index: 0, kind: input, shape index: {}]
  %s1 = inlined_call_operand.vmem [shape: f32[8,1], index: 1, kind: output, shape index: {}]
  %s2 = sld [smem:[#allocation0]]
  $region18: #{tpu_custom_call.1} parent=0
    _
  %s4 = ssub.s32 1, %s2
  %s5 = scalar_select 0, %s4, %s2
  $region1: #{tpu_custom_call.1} parent=0
    #allocation2 [shape = 'u8[8192]{0}', space=vmem, size = 0x2000, scoped, tag = 'input window, operand 0, single buffered']
    #allocation3 [shape = 's32[1]{0}', space=sflag, size = 0x4, scoped, tag = 'scoped memory for tpu_custom_call.1']
    %6 = vsyncpa [#allocation3], 0
    // Predicated region
    $region2: #{tpu_custom_call.1} parent=1 // pred_check
      _
    $region3: #{tpu_custom_call.1} parent=1 // pred_check_branch
      %8 = sbr.rel (0) target = $region5
    $region4: #{tpu_custom_call.1} parent=1 // pred_region
      %s10 = ssub.s32 256, 256
      %11 = vsyncadd [#allocation3], %s10
      %s13 = sshll.u32 [#allocation2], 4
      %s14 = int_to_ptr.vmem [resolvable:$true] %s13
      %16 = dma.hbm_to_vmem [thread:$0]  %s0, 256, %s14, [#allocation3]
    $region5: #{tpu_custom_call.1} parent=1 // pred_fallthru
      _
    // Predicated region
    $region6: #{tpu_custom_call.1} parent=1 // pred_check
      _
    $region7: #{tpu_custom_call.1} parent=1 // pred_check_branch
      %18 = sbr.rel (0) target = $region9
    $region8: #{tpu_custom_call.1} parent=1 // pred_region
      %19 = dma.done [#allocation3], 256
    $region9: #{tpu_custom_call.1} parent=1 // pred_fallthru
      _
    %v20 = vld [vmem:[#allocation2] sm:$0xff]
    %v21 = vld [vmem:[#allocation2 + $0x8] sm:$0xff]
    %v22 = vadd.f32 %v20, %v21
    %23 = vadd.xlane.f32.xlu0 %v22
    %v24 = vpop.xlane.xlu0 %23
    %v25 = vmul.f32 %v24, 0.00390625
    %vm26 = vcmask 7168
    %27 = vst.msk [vmem:[%s1] sm:$0xff] %vm26, %v25
    // Predicated region
    $region10: #{tpu_custom_call.1} parent=1 // pred_check
      _
    $region11: #{tpu_custom_call.1} parent=1 // pred_check_branch
      %29 = sbr.rel (0) target = $region13
    $region12: #{tpu_custom_call.1} parent=1 // pred_region
      _
    $region13: #{tpu_custom_call.1} parent=1 // pred_fallthru
      _
    // Predicated region
    $region14: #{tpu_custom_call.1} parent=1 // pred_check
      _
    $region15: #{tpu_custom_call.1} parent=1 // pred_check_branch
      %31 = sbr.rel (0) target = $region17
    $region16: #{tpu_custom_call.1} parent=1 // pred_region
      _
    $region17: #{tpu_custom_call.1} parent=1 // pred_fallthru
      _
    %32 = vsyncpa [#allocation3], 1

</llo_original>
